<compile_context>
chip_gen: v7x
topology: tpu7x:2x2x1
jax: 0.10.0
libtpu: 0.0.40
codegen_flags: <defaults>
</compile_context>

<pallas_src>
import functools

import jax
import jax.numpy as jnp
from jax import lax
from jax.experimental import pallas as pl
from jax.experimental.pallas import tpu as pltpu

LANES = 128
MAX_BLOCK_ROWS = 4096          # 4096 x 128 x 4 B = 2 MiB per f32 input block
CHUNK_ROWS = 512               # in-kernel sub-chunk -> ~256 KiB vector temporaries
NCORES = 2                     # "parallel" axis: 2 TCs on v7x, harmless on v5e/v6e
VMEM_LIMIT_BYTES = 32 * 1024 * 1024
SCALE = 1.4142                 # constant from the PyTorch module


def _sublane_align(dtype):
    """Native sublane tiling: f32 -> 8, bf16/f16 -> 16, 1-byte dtypes -> 32."""
    itemsize = jnp.dtype(dtype).itemsize
    if itemsize >= 4:
        return 8
    if itemsize == 2:
        return 16
    return 32


def _loss_kernel(inp_ref, tgt_ref, logv_ref, out_ref, acc_ref, *,
                 rows_kernel, block_rows, chunk_rows):
    """grid = (ncores, steps): axis 0 'parallel' (megacore split), axis 1 is the
    sequential reduction over the row-blocks assigned to that core."""
    c = pl.program_id(0)
    i = pl.program_id(1)
    steps = pl.num_programs(1)

    @pl.when(i == 0)
    def _init():
        acc_ref[...] = jnp.zeros_like(acc_ref)

    # Logical (un-clamped) block id.  The index_map clamps the actual DMA, so a
    # core's past-the-end step just re-reads the last real block; it contributes
    # nothing because rows_remaining <= 0 masks every row.  All index math is on
    # ROW counts (not element counts), so int32 is safe for any HBM-sized input.
    logical_block = c * steps + i
    block_start_row = logical_block * block_rows
    rows_remaining = rows_kernel - block_start_row

    num_chunks = block_rows // chunk_rows

    def _chunk_loss(j):
        off = pl.multiple_of(j * chunk_rows, chunk_rows)
        x = inp_ref[pl.ds(off, chunk_rows), :].astype(jnp.float32)
        t = tgt_ref[pl.ds(off, chunk_rows), :].astype(jnp.float32)
        lv = logv_ref[pl.ds(off, chunk_rows), :].astype(jnp.float32)
        return SCALE * jnp.exp(-lv) * jnp.abs(x - t) + lv

    def _fold(loss):
        # (chunk_rows,128) -> (chunk_rows//8, 8, 128) -> sum over the leading
        # axis: pure vreg-wise VALU adds, no cross-lane XLU work.
        return loss.reshape(chunk_rows // 8, 8, LANES).sum(axis=0)

    needs_mask = rows_remaining < block_rows

    @pl.when(jnp.logical_not(needs_mask))
    def _hot():  # full block of real data: unmasked accumulate
        def body(j, acc):
            return acc + _fold(_chunk_loss(j))
        acc_ref[...] += lax.fori_loop(0, num_chunks, body,
                                      jnp.zeros((8, LANES), jnp.float32),
                                      unroll=True)

    @pl.when(needs_mask)
    def _tail():
        # Rows at/beyond `rows_remaining` hold clipped / stale VMEM (possibly
        # NaN/Inf after exp); the select below discards them element-wise, which
        # is numerically safe (select does not propagate the unselected operand).
        row = lax.broadcasted_iota(jnp.int32, (chunk_rows, LANES), 0)

        def body(j, acc):
            loss = _chunk_loss(j)
            valid = row < (rows_remaining - j * chunk_rows)
            return acc + _fold(jnp.where(valid, loss, 0.0))
        acc_ref[...] += lax.fori_loop(0, num_chunks, body,
                                      jnp.zeros((8, LANES), jnp.float32),
                                      unroll=True)

    @pl.when(i == steps - 1)
    def _finalize():  # dump the raw per-core partial block; no in-kernel XLU reduce
        out_ref[...] = acc_ref[...]


def _elementwise_loss(x, t, lv):
    x = x.astype(jnp.float32)
    t = t.astype(jnp.float32)
    lv = lv.astype(jnp.float32)
    return SCALE * jnp.exp(-lv) * jnp.abs(x - t) + lv


@functools.partial(jax.jit, static_argnames=("loss_weight",))
def laplacian_aleatoric_uncertainty_loss(input, target, log_variance, loss_weight=1.0):
    n = input.size                                   # true element count
    sub = max(_sublane_align(input.dtype),
              _sublane_align(target.dtype),
              _sublane_align(log_variance.dtype))

    rows_total = n // LANES
    rows_kernel = (rows_total // sub) * sub          # sublane-aligned prefix for the kernel
    prefix = rows_kernel * LANES

    in_flat = input.reshape(-1)
    tgt_flat = target.reshape(-1)
    lv_flat = log_variance.reshape(-1)

    total = jnp.float32(0.0)

    if rows_kernel > 0:
        block_rows = min(MAX_BLOCK_ROWS, rows_kernel)
        chunk_rows = CHUNK_ROWS if block_rows % CHUNK_ROWS == 0 else block_rows

        # Lane-dense 2D view of the aligned prefix; no jnp.pad copy.
        inp2d = in_flat[:prefix].reshape(rows_kernel, LANES)
        tgt2d = tgt_flat[:prefix].reshape(rows_kernel, LANES)
        lv2d = lv_flat[:prefix].reshape(rows_kernel, LANES)

        num_blocks = pl.cdiv(rows_kernel, block_rows)
        ncores = min(NCORES, num_blocks)
        steps_per_core = pl.cdiv(num_blocks, ncores)

        def in_index(c, i):
            # Clamp so a core's past-the-end step re-reads the last real block;
            # its contribution is fully masked inside the kernel.
            return (jnp.minimum(c * steps_per_core + i, num_blocks - 1), 0)

        tile_spec = pl.BlockSpec((block_rows, LANES), in_index)

        partials = pl.pallas_call(
            functools.partial(_loss_kernel, rows_kernel=rows_kernel,
                              block_rows=block_rows, chunk_rows=chunk_rows),
            out_shape=jax.ShapeDtypeStruct((ncores * 8, LANES), jnp.float32),
            grid_spec=pltpu.PrefetchScalarGridSpec(
                num_scalar_prefetch=0,
                grid=(ncores, steps_per_core),
                in_specs=[tile_spec, tile_spec, tile_spec],
                out_specs=pl.BlockSpec((8, LANES), lambda c, i: (c, 0)),
                scratch_shapes=[pltpu.VMEM((8, LANES), jnp.float32)],
            ),
            compiler_params=pltpu.CompilerParams(
                dimension_semantics=("parallel", "arbitrary"),
                vmem_limit_bytes=VMEM_LIMIT_BYTES,   # 12 MiB double-buffered inputs + temporaries
            ),
        )(inp2d, tgt2d, lv2d)
        total = total + partials.sum()               # <= 2048 floats reduced in JAX

    if prefix < n:
        # Tiny unaligned tail (< sub*128 + 128 elements) summed in plain JAX.
        total = total + _elementwise_loss(in_flat[prefix:],
                                          tgt_flat[prefix:],
                                          lv_flat[prefix:]).sum()

    mean = total / jnp.float32(n)
    return mean * jnp.float32(loss_weight)


def _reference(input, target, log_variance, loss_weight=1.0):
    lv = log_variance.reshape(-1).astype(jnp.float32)
    x = input.reshape(-1).astype(jnp.float32)
    t = target.reshape(-1).astype(jnp.float32)
    loss = SCALE * jnp.exp(-lv) * jnp.abs(x - t) + lv
    return jnp.mean(loss) * loss_weight


def _run_case(key, shape, loss_weight=1.0):
    k1, k2, k3 = jax.random.split(key, 3)
    inp = jax.random.normal(k1, shape, dtype=jnp.float32)
    tgt = jax.random.normal(k2, shape, dtype=jnp.float32)
    logv = 0.5 * jax.random.normal(k3, shape, dtype=jnp.float32)
    out = laplacian_aleatoric_uncertainty_loss(inp, tgt, logv, loss_weight=loss_weight)
    out = jax.block_until_ready(out)
    ref = _reference(inp, tgt, logv, loss_weight=loss_weight)
    assert jnp.allclose(out, ref, rtol=1e-5, atol=1e-5), (shape, out, ref)
    return out


if __name__ == "__main__":
    key = jax.random.PRNGKey(0)
    k_main, k_tail, k_big = jax.random.split(key, 3)

    # Primary small NCHW example, consistent with a detection-head output.
    _run_case(k_main, (2, 4, 16, 16), loss_weight=1.0)

    # Extra coverage: unaligned tail handled in JAX epilogue.
    _run_case(k_tail, (3, 5, 7, 11), loss_weight=0.5)

    # Extra coverage: multi-block grid with a masked partial last block + 2-core split.
    _run_case(k_big, (4, 37, 4096), loss_weight=1.0)

    print("KERNEL_OK")
</pallas_src>

<mosaic_0001>
module attributes {stable_mosaic.version = 11 : i64} {
  func.func @_loss_kernel(%arg0: i32, %arg1: i32, %arg2: memref<16x128xf32, #tpu.memory_space<vmem>>, %arg3: memref<16x128xf32, #tpu.memory_space<vmem>>, %arg4: memref<16x128xf32, #tpu.memory_space<vmem>>, %arg5: memref<8x128xf32, #tpu.memory_space<vmem>>, %arg6: memref<8x128xf32, #tpu.memory_space<vmem>>) attributes {dimension_semantics = [#tpu.dimension_semantics<parallel>, #tpu.dimension_semantics<arbitrary>], iteration_bounds = array<i64: 1, 1>, scalar_prefetch = 0 : i64, scratch_operands = 1 : i64, tpu.core_type = #tpu.core_type<tc>, window_params = [{transform_indices = @transform_0, window_bounds = array<i64: 16, 128>}, {transform_indices = @transform_1, window_bounds = array<i64: 16, 128>}, {transform_indices = @transform_2, window_bounds = array<i64: 16, 128>}, {transform_indices = @transform_3, window_bounds = array<i64: 8, 128>}]} {
    %c0_i32 = arith.constant 0 : i32
    %0 = arith.cmpi eq, %arg1, %c0_i32 : i32
    %1 = arith.extui %0 : i1 to i32
    %c0_i32_0 = arith.constant 0 : i32
    %2 = arith.cmpi ne, %1, %c0_i32_0 : i32
    scf.if %2 {
      %cst = arith.constant 0.000000e+00 : f32
      %16 = vector.broadcast %cst : f32 to vector<8x128xf32>
      %c0 = arith.constant 0 : index
      %c0_7 = arith.constant 0 : index
      %17 = vector.load %arg6[%c0, %c0_7] : memref<8x128xf32, #tpu.memory_space<vmem>>, vector<8x128xf32>
      tpu.vector_store %arg6[%c0, %c0_7], %16 {strides = array<i32>} : memref<8x128xf32, #tpu.memory_space<vmem>>, vector<8x128xf32>,
    } else {
    }
    %c1_i32 = arith.constant 1 : i32
    %3 = arith.muli %arg0, %c1_i32 : i32
    %4 = arith.addi %3, %arg1 : i32
    %c16_i32 = arith.constant 16 : i32
    %5 = arith.muli %4, %c16_i32 : i32
    %c16_i32_1 = arith.constant 16 : i32
    %6 = arith.subi %c16_i32_1, %5 : i32
    %c16_i32_2 = arith.constant 16 : i32
    %7 = arith.cmpi slt, %6, %c16_i32_2 : i32
    %true = arith.constant true
    %8 = arith.xori %7, %true : i1
    %9 = arith.extui %8 : i1 to i32
    %c0_i32_3 = arith.constant 0 : i32
    %10 = arith.cmpi ne, %9, %c0_i32_3 : i32
    scf.if %10 {
      %c0 = arith.constant 0 : index
      %c0_7 = arith.constant 0 : index
      %16 = vector.load %arg6[%c0, %c0_7] : memref<8x128xf32, #tpu.memory_space<vmem>>, vector<8x128xf32>
      %cst = arith.constant 0.000000e+00 : f32
      %17 = vector.broadcast %cst : f32 to vector<8x128xf32>
      %c0_i32_8 = arith.constant 0 : i32
      %c16_i32_9 = arith.constant 16 : i32
      %18 = arith.muli %c0_i32_8, %c16_i32_9 : i32
      %19 = tpu.assume_multiple %18, 16 : i32
      %20 = arith.index_cast %19 : i32 to index
      %c0_10 = arith.constant 0 : index
      %21 = vector.load %arg2[%20, %c0_10] : memref<16x128xf32, #tpu.memory_space<vmem>>, vector<16x128xf32>
      %22 = arith.index_cast %19 : i32 to index
      %c0_11 = arith.constant 0 : index
      %23 = vector.load %arg3[%22, %c0_11] : memref<16x128xf32, #tpu.memory_space<vmem>>, vector<16x128xf32>
      %24 = arith.index_cast %19 : i32 to index
      %c0_12 = arith.constant 0 : index
      %25 = vector.load %arg4[%24, %c0_12] : memref<16x128xf32, #tpu.memory_space<vmem>>, vector<16x128xf32>
      %cst_13 = arith.constant 0.000000e+00 : f32
      %26 = vector.broadcast %cst_13 : f32 to vector<16x128xf32>
      %27 = arith.subf %26, %25 : vector<16x128xf32>
      %28 = math.exp %27 : vector<16x128xf32>
      %cst_14 = arith.constant 1.414200e+00 : f32
      %29 = vector.broadcast %cst_14 : f32 to vector<16x128xf32>
      %30 = arith.mulf %29, %28 : vector<16x128xf32>
      %31 = arith.subf %21, %23 : vector<16x128xf32>
      %32 = math.absf %31 : vector<16x128xf32>
      %33 = arith.mulf %30, %32 : vector<16x128xf32>
      %34 = arith.addf %33, %25 : vector<16x128xf32>
      %35 = vector.shape_cast %34 : vector<16x128xf32> to vector<2x8x128xf32>
      %cst_15 = arith.constant dense<0.000000e+00> : vector<8x128xf32>
      %36 = vector.multi_reduction <add>, %35, %cst_15 [0] : vector<2x8x128xf32> to vector<8x128xf32>
      %37 = arith.addf %17, %36 : vector<8x128xf32>
      %c1_i32_16 = arith.constant 1 : i32
      %38 = arith.addf %16, %37 : vector<8x128xf32>
      %c0_17 = arith.constant 0 : index
      %c0_18 = arith.constant 0 : index
      %39 = vector.load %arg6[%c0_17, %c0_18] : memref<8x128xf32, #tpu.memory_space<vmem>>, vector<8x128xf32>
      tpu.vector_store %arg6[%c0_17, %c0_18], %38 {strides = array<i32>} : memref<8x128xf32, #tpu.memory_space<vmem>>, vector<8x128xf32>,
    } else {
    }
    %11 = arith.extui %7 : i1 to i32
    %c0_i32_4 = arith.constant 0 : i32
    %12 = arith.cmpi ne, %11, %c0_i32_4 : i32
    scf.if %12 {
      %16 = tpu.iota {dimensions = array<i32: 0>} : vector<16x128xi32>
      %c0 = arith.constant 0 : index
      %c0_7 = arith.constant 0 : index
      %17 = vector.load %arg6[%c0, %c0_7] : memref<8x128xf32, #tpu.memory_space<vmem>>, vector<8x128xf32>
      %cst = arith.constant 0.000000e+00 : f32
      %18 = vector.broadcast %cst : f32 to vector<8x128xf32>
      %c0_i32_8 = arith.constant 0 : i32
      %c16_i32_9 = arith.constant 16 : i32
      %19 = arith.muli %c0_i32_8, %c16_i32_9 : i32
      %20 = tpu.assume_multiple %19, 16 : i32
      %21 = arith.index_cast %20 : i32 to index
      %c0_10 = arith.constant 0 : index
      %22 = vector.load %arg2[%21, %c0_10] : memref<16x128xf32, #tpu.memory_space<vmem>>, vector<16x128xf32>
      %23 = arith.index_cast %20 : i32 to index
      %c0_11 = arith.constant 0 : index
      %24 = vector.load %arg3[%23, %c0_11] : memref<16x128xf32, #tpu.memory_space<vmem>>, vector<16x128xf32>
      %25 = arith.index_cast %20 : i32 to index
      %c0_12 = arith.constant 0 : index
      %26 = vector.load %arg4[%25, %c0_12] : memref<16x128xf32, #tpu.memory_space<vmem>>, vector<16x128xf32>
      %cst_13 = arith.constant 0.000000e+00 : f32
      %27 = vector.broadcast %cst_13 : f32 to vector<16x128xf32>
      %28 = arith.subf %27, %26 : vector<16x128xf32>
      %29 = math.exp %28 : vector<16x128xf32>
      %cst_14 = arith.constant 1.414200e+00 : f32
      %30 = vector.broadcast %cst_14 : f32 to vector<16x128xf32>
      %31 = arith.mulf %30, %29 : vector<16x128xf32>
      %32 = arith.subf %22, %24 : vector<16x128xf32>
      %33 = math.absf %32 : vector<16x128xf32>
      %34 = arith.mulf %31, %33 : vector<16x128xf32>
      %35 = arith.addf %34, %26 : vector<16x128xf32>
      %c16_i32_15 = arith.constant 16 : i32
      %36 = arith.muli %c0_i32_8, %c16_i32_15 : i32
      %37 = arith.subi %6, %36 : i32
      %38 = vector.broadcast %37 : i32 to vector<16x128xi32>
      %39 = arith.cmpi slt, %16, %38 : vector<16x128xi32>
      %cst_16 = arith.constant 0.000000e+00 : f32
      %40 = vector.broadcast %cst_16 : f32 to vector<16x128xf32>
      %41 = arith.select %39, %35, %40 : vector<16x128xi1>, vector<16x128xf32>
      %42 = vector.shape_cast %41 : vector<16x128xf32> to vector<2x8x128xf32>
      %cst_17 = arith.constant dense<0.000000e+00> : vector<8x128xf32>
      %43 = vector.multi_reduction <add>, %42, %cst_17 [0] : vector<2x8x128xf32> to vector<8x128xf32>
      %44 = arith.addf %18, %43 : vector<8x128xf32>
      %c1_i32_18 = arith.constant 1 : i32
      %45 = arith.addf %17, %44 : vector<8x128xf32>
      %c0_19 = arith.constant 0 : index
      %c0_20 = arith.constant 0 : index
      %46 = vector.load %arg6[%c0_19, %c0_20] : memref<8x128xf32, #tpu.memory_space<vmem>>, vector<8x128xf32>
      tpu.vector_store %arg6[%c0_19, %c0_20], %45 {strides = array<i32>} : memref<8x128xf32, #tpu.memory_space<vmem>>, vector<8x128xf32>,
    } else {
    }
    %c0_i32_5 = arith.constant 0 : i32
    %13 = arith.cmpi eq, %arg1, %c0_i32_5 : i32
    %14 = arith.extui %13 : i1 to i32
    %c0_i32_6 = arith.constant 0 : i32
    %15 = arith.cmpi ne, %14, %c0_i32_6 : i32
    scf.if %15 {
      %c0 = arith.constant 0 : index
      %c0_7 = arith.constant 0 : index
      %16 = vector.load %arg6[%c0, %c0_7] : memref<8x128xf32, #tpu.memory_space<vmem>>, vector<8x128xf32>
      %c0_8 = arith.constant 0 : index
      %c0_9 = arith.constant 0 : index
      %17 = vector.load %arg5[%c0_8, %c0_9] : memref<8x128xf32, #tpu.memory_space<vmem>>, vector<8x128xf32>
      tpu.vector_store %arg5[%c0_8, %c0_9], %16 {strides = array<i32>} : memref<8x128xf32, #tpu.memory_space<vmem>>, vector<8x128xf32>,
    } else {
    }
    return
  }
  func.func @transform_0(%arg0: i32, %arg1: i32) -> (i32, i32) {
    %c1_i32 = arith.constant 1 : i32
    %0 = arith.muli %arg0, %c1_i32 : i32
    %1 = arith.addi %0, %arg1 : i32
    %c0_i32 = arith.constant 0 : i32
    %2 = arith.minsi %1, %c0_i32 : i32
    %c0_i32_0 = arith.constant 0 : i32
    %c0_i32_1 = arith.constant 0 : i32
    return %2, %c0_i32_0 : i32, i32
  }
  func.func @transform_1(%arg0: i32, %arg1: i32) -> (i32, i32) {
    %c1_i32 = arith.constant 1 : i32
    %0 = arith.muli %arg0, %c1_i32 : i32
    %1 = arith.addi %0, %arg1 : i32
    %c0_i32 = arith.constant 0 : i32
    %2 = arith.minsi %1, %c0_i32 : i32
    %c0_i32_0 = arith.constant 0 : i32
    %c0_i32_1 = arith.constant 0 : i32
    return %2, %c0_i32_0 : i32, i32
  }
  func.func @transform_2(%arg0: i32, %arg1: i32) -> (i32, i32) {
    %c1_i32 = arith.constant 1 : i32
    %0 = arith.muli %arg0, %c1_i32 : i32
    %1 = arith.addi %0, %arg1 : i32
    %c0_i32 = arith.constant 0 : i32
    %2 = arith.minsi %1, %c0_i32 : i32
    %c0_i32_0 = arith.constant 0 : i32
    %c0_i32_1 = arith.constant 0 : i32
    return %2, %c0_i32_0 : i32, i32
  }
  func.func @transform_3(%arg0: i32, %arg1: i32) -> (i32, i32) {
    %c0_i32 = arith.constant 0 : i32
    %c0_i32_0 = arith.constant 0 : i32
    return %arg0, %c0_i32 : i32, i32
  }
}

</mosaic_0001>

<llo_original>
// kernel: laplacian_aleatoric_uncertainty_loss.1
$region0: #{laplacian_aleatoric_uncertainty_loss.1}
  #allocation0 [shape = 'u32[]', space=smem, size = 0x4, offset = 0x4, fixed_abs, tag = 'smem constant byte address 0x4 - core index']
  #allocation1 [shape = 'u32[144,128]{1,0:T(1,128)}', space=vmem, size = 0x12000, scoped, tag = 'internal scratch']
  #allocation2 [shape = 'f32[8,128]{1,0:T(8,128)}', space=vmem, size = 0x1000, scoped, tag = 'scratch operand']
  %s0 = inlined_call_operand.vmem [shape: f32[16,128], index: 0, kind: input, shape index: {}]
  %s1 = inlined_call_operand.vmem [shape: f32[16,128], index: 1, kind: input, shape index: {}]
  %s2 = inlined_call_operand.vmem [shape: f32[16,128], index: 2, kind: input, shape index: {}]
  %s3 = inlined_call_operand.vmem [shape: f32[8,128], index: 3, kind: output, shape index: {}]
  %s4 = sld [smem:[#allocation0]]
  $region38: #{laplacian_aleatoric_uncertainty_loss.1} parent=0
    _
  %s6 = ssub.s32 1, %s4
  %s7 = scalar_select 0, %s6, %s4
  // Predicated region
  $region2: #{laplacian_aleatoric_uncertainty_loss.1} parent=0 // pred_check
    _
  $region3: #{laplacian_aleatoric_uncertainty_loss.1} parent=0 // pred_check_branch
    %9 = sbr.rel (0) target = $region5
  $region4: #{laplacian_aleatoric_uncertainty_loss.1} parent=0 // pred_region
    %s10 = sadd.s32 0, 0
    %p11 = scmp.lt.s32.totalorder %s10, 0
    %s12 = scalar_select %p11, %s10, 0
    %s13 = smul.u32 2, %s12
    %p14 = scmp.lt.s32.totalorder %s13, 1
    %s15 = scalar_select %p14, %s13, 1
    %s16 = smul.addr %s15, 8
    %s17 = scalar_lea.vmem %s0, %s16
    %s18 = sadd.s32 0, 0
    %p19 = scmp.lt.s32.totalorder %s18, 0
    %s20 = scalar_select %p19, %s18, 0
    %s21 = smul.u32 2, %s20
  $region5: #{laplacian_aleatoric_uncertainty_loss.1} parent=0 // pred_fallthru
    _
  // Predicated region
  $region6: #{laplacian_aleatoric_uncertainty_loss.1} parent=0 // pred_check
    _
  $region7: #{laplacian_aleatoric_uncertainty_loss.1} parent=0 // pred_check_branch
    %23 = sbr.rel (0) target = $region9
  $region8: #{laplacian_aleatoric_uncertainty_loss.1} parent=0 // pred_region
    %s24 = sadd.s32 0, 0
    %p25 = scmp.lt.s32.totalorder %s24, 0
    %s26 = scalar_select %p25, %s24, 0
    %s27 = smul.u32 2, %s26
    %p28 = scmp.lt.s32.totalorder %s27, 1
    %s29 = scalar_select %p28, %s27, 1
    %s30 = smul.addr %s29, 8
    %s31 = scalar_lea.vmem %s1, %s30
    %s32 = sadd.s32 0, 0
    %p33 = scmp.lt.s32.totalorder %s32, 0
    %s34 = scalar_select %p33, %s32, 0
    %s35 = smul.u32 2, %s34
  $region9: #{laplacian_aleatoric_uncertainty_loss.1} parent=0 // pred_fallthru
    _
  // Predicated region
  $region10: #{laplacian_aleatoric_uncertainty_loss.1} parent=0 // pred_check
    _
  $region11: #{laplacian_aleatoric_uncertainty_loss.1} parent=0 // pred_check_branch
    %37 = sbr.rel (0) target = $region13
  $region12: #{laplacian_aleatoric_uncertainty_loss.1} parent=0 // pred_region
    %s38 = sadd.s32 0, 0
    %p39 = scmp.lt.s32.totalorder %s38, 0
    %s40 = scalar_select %p39, %s38, 0
    %s41 = smul.u32 2, %s40
    %p42 = scmp.lt.s32.totalorder %s41, 1
    %s43 = scalar_select %p42, %s41, 1
    %s44 = smul.addr %s43, 8
    %s45 = scalar_lea.vmem %s2, %s44
    %s46 = sadd.s32 0, 0
    %p47 = scmp.lt.s32.totalorder %s46, 0
    %s48 = scalar_select %p47, %s46, 0
    %s49 = smul.u32 2, %s48
  $region13: #{laplacian_aleatoric_uncertainty_loss.1} parent=0 // pred_fallthru
    _
  %s50 = sadd.s32 0, 0
  %p51 = scmp.lt.s32.totalorder %s50, 0
  %s52 = scalar_select %p51, %s50, 0
  %s53 = smul.u32 2, %s52
  %p54 = scmp.lt.s32.totalorder %s53, 1
  %s55 = scalar_select %p54, %s53, 1
  %s56 = smul.addr %s55, 8
  %s57 = scalar_lea.vmem %s0, %s56
  %s58 = sadd.s32 0, 0
  %p59 = scmp.lt.s32.totalorder %s58, 0
  %s60 = scalar_select %p59, %s58, 0
  %s61 = smul.u32 2, %s60
  %p62 = scmp.lt.s32.totalorder %s61, 1
  %s63 = scalar_select %p62, %s61, 1
  %s64 = smul.addr %s63, 8
  %s65 = scalar_lea.vmem %s1, %s64
  %s66 = sadd.s32 0, 0
  %p67 = scmp.lt.s32.totalorder %s66, 0
  %s68 = scalar_select %p67, %s66, 0
  %s69 = smul.u32 2, %s68
  %p70 = scmp.lt.s32.totalorder %s69, 1
  %s71 = scalar_select %p70, %s69, 1
  %s72 = smul.addr %s71, 8
  %s73 = scalar_lea.vmem %s2, %s72
  %s74 = sadd.s32 0, 0
  %p75 = scmp.lt.s32.totalorder %s74, 0
  %s76 = scalar_select %p75, %s74, 0
  %s77 = smul.u32 2, %s76
  %p78 = scmp.lt.s32.totalorder %s77, 1
  %s79 = scalar_select %p78, %s77, 1
  %s80 = smul.addr %s79, 8
  %s81 = scalar_lea.vmem %s0, %s80
  %s82 = sadd.s32 0, 0
  %p83 = scmp.lt.s32.totalorder %s82, 0
  %s84 = scalar_select %p83, %s82, 0
  %s85 = smul.u32 2, %s84
  %s86 = sadd.s32 0, 0
  %p87 = scmp.lt.s32.totalorder %s86, 0
  %s88 = scalar_select %p87, %s86, 0
  %s89 = smul.u32 2, %s88
  %p90 = scmp.lt.s32.totalorder %s89, 1
  %s91 = scalar_select %p90, %s89, 1
  %s92 = smul.addr %s91, 8
  %s93 = scalar_lea.vmem %s1, %s92
  %s94 = sadd.s32 0, 0
  %p95 = scmp.lt.s32.totalorder %s94, 0
  %s96 = scalar_select %p95, %s94, 0
  %s97 = smul.u32 2, %s96
  %s98 = sadd.s32 0, 0
  %p99 = scmp.lt.s32.totalorder %s98, 0
  %s100 = scalar_select %p99, %s98, 0
  %s101 = smul.u32 2, %s100
  %p102 = scmp.lt.s32.totalorder %s101, 1
  %s103 = scalar_select %p102, %s101, 1
  %s104 = smul.addr %s103, 8
  %s105 = scalar_lea.vmem %s2, %s104
  %s106 = sadd.s32 0, 0
  %p107 = scmp.lt.s32.totalorder %s106, 0
  %s108 = scalar_select %p107, %s106, 0
  %s109 = smul.u32 2, %s108
  %p110 = scmp.eq.s32.totalorder 0, 0
  // Predicated region
  $region14: #{laplacian_aleatoric_uncertainty_loss.1} parent=0 // pred_check
    %p111 = pneg %p110
  $region15: #{laplacian_aleatoric_uncertainty_loss.1} parent=0 // pred_check_branch
    %113 = sbr.rel (%p111) target = $region17
  $region16: #{laplacian_aleatoric_uncertainty_loss.1} parent=0 // pred_region
    %114 = vst [vmem:[#allocation2] sm:$0xff] 0.0
  $region17: #{laplacian_aleatoric_uncertainty_loss.1} parent=0 // pred_fallthru
    _
  %s115 = sadd.s32 0, 0
  %s116 = smul.u32 %s115, 16
  %s117 = ssub.s32 16, %s116
  %p118 = scmp.lt.s32.totalorder %s117, 16
  %p119 = scmp.ge.s32.totalorder %s117, 16
  // Predicated region
  $region18: #{laplacian_aleatoric_uncertainty_loss.1} parent=0 // pred_check
    %p120 = pneg %p119
  $region19: #{laplacian_aleatoric_uncertainty_loss.1} parent=0 // pred_check_branch
    %122 = sbr.rel (%p120) target = $region21
  $region20: #{laplacian_aleatoric_uncertainty_loss.1} parent=0 // pred_region
    %v123 = vld [vmem:[#allocation2] sm:$0xff]
    %v124 = vld [vmem:[%s81] sm:$0xff]
    %v125 = vld [vmem:[%s81 + $0x8] sm:$0xff]
    %v126 = vld [vmem:[%s93] sm:$0xff]
    %v127 = vld [vmem:[%s93 + $0x8] sm:$0xff]
    %v128 = vld [vmem:[%s105] sm:$0xff]
    %v129 = vld [vmem:[%s105 + $0x8] sm:$0xff]
    %v130 = vsub.f32 0.0, %v128
    %v131 = vsub.f32 0.0, %v129
    %v132 = vmul.f32 %v130, 1.442695
    %v133 = vpow.pop %v132
    %v134 = vmul.f32 %v131, 1.442695
    %v135 = vpow.pop %v134
    %v136 = vmul.f32 %v133, 1.4142
    %v137 = vmul.f32 %v135, 1.4142
    %v138 = vsub.f32 %v124, %v126
    %v139 = vsub.f32 %v125, %v127
    %v140 = vand.u32 2147483647, %v138
    %v141 = vand.u32 2147483647, %v139
    %v142 = vmul.f32 %v136, %v140
    %v143 = vmul.f32 %v137, %v141
    %v144 = vadd.f32 %v142, %v128
    %v145 = vadd.f32 %v143, %v129
    %v146 = vadd.f32 %v144, %v145
    %v147 = vadd.f32 %v146, 0.0
    %v148 = vadd.f32 %v123, %v147
    %149 = vst [vmem:[#allocation2] sm:$0xff] %v148
  $region21: #{laplacian_aleatoric_uncertainty_loss.1} parent=0 // pred_fallthru
    _
  // Predicated region
  $region22: #{laplacian_aleatoric_uncertainty_loss.1} parent=0 // pred_check
    %p150 = pneg %p118
  $region23: #{laplacian_aleatoric_uncertainty_loss.1} parent=0 // pred_check_branch
    %152 = sbr.rel (%p150) target = $region25
  $region24: #{laplacian_aleatoric_uncertainty_loss.1} parent=0 // pred_region
    %v153 = vlaneseq
    %v154 = vshrl.u32 %v153, 7
    %v155 = vadd.s32 %v154, 8
    %v156 = vld [vmem:[#allocation2] sm:$0xff]
    %v157 = vld [vmem:[%s81] sm:$0xff]
    %v158 = vld [vmem:[%s81 + $0x8] sm:$0xff]
    %v159 = vld [vmem:[%s93] sm:$0xff]
    %v160 = vld [vmem:[%s93 + $0x8] sm:$0xff]
    %v161 = vld [vmem:[%s105] sm:$0xff]
    %v162 = vld [vmem:[%s105 + $0x8] sm:$0xff]
    %v163 = vsub.f32 0.0, %v161
    %v164 = vsub.f32 0.0, %v162
    %v165 = vmul.f32 %v163, 1.442695
    %v166 = vpow.pop %v165
    %v167 = vmul.f32 %v164, 1.442695
    %v168 = vpow.pop %v167
    %v169 = vmul.f32 %v166, 1.4142
    %v170 = vmul.f32 %v168, 1.4142
    %v171 = vsub.f32 %v157, %v159
    %v172 = vsub.f32 %v158, %v160
    %v173 = vand.u32 2147483647, %v171
    %v174 = vand.u32 2147483647, %v172
    %v175 = vmul.f32 %v169, %v173
    %v176 = vmul.f32 %v170, %v174
    %v177 = vadd.f32 %v175, %v161
    %v178 = vadd.f32 %v176, %v162
    %v179 = vstv %s117
    %vm180 = vcmp.lt.s32.totalorder %v154, %v179
    %vm181 = vcmp.lt.s32.totalorder %v155, %v179
    %v182 = vsel %vm180, %v177, 0.0
    %v183 = vsel %vm181, %v178, 0.0
    %v184 = vadd.f32 %v182, %v183
    %v185 = vadd.f32 %v184, 0.0
    %v186 = vadd.f32 %v156, %v185
    %187 = vst [vmem:[#allocation2] sm:$0xff] %v186
  $region25: #{laplacian_aleatoric_uncertainty_loss.1} parent=0 // pred_fallthru
    _
  // Predicated region
  $region26: #{laplacian_aleatoric_uncertainty_loss.1} parent=0 // pred_check
    %p188 = pneg %p110
  $region27: #{laplacian_aleatoric_uncertainty_loss.1} parent=0 // pred_check_branch
    %190 = sbr.rel (%p188) target = $region29
  $region28: #{laplacian_aleatoric_uncertainty_loss.1} parent=0 // pred_region
    %v191 = vld [vmem:[#allocation2] sm:$0xff]
    %192 = vst [vmem:[%s3] sm:$0xff] %v191
  $region29: #{laplacian_aleatoric_uncertainty_loss.1} parent=0 // pred_fallthru
    _
  // Predicated region
  $region30: #{laplacian_aleatoric_uncertainty_loss.1} parent=0 // pred_check
    _
  $region31: #{laplacian_aleatoric_uncertainty_loss.1} parent=0 // pred_check_branch
    %194 = sbr.rel (0) target = $region33
  $region32: #{laplacian_aleatoric_uncertainty_loss.1} parent=0 // pred_region
    _
  $region33: #{laplacian_aleatoric_uncertainty_loss.1} parent=0 // pred_fallthru
    _
  // Predicated region
  $region34: #{laplacian_aleatoric_uncertainty_loss.1} parent=0 // pred_check
    _
  $region35: #{laplacian_aleatoric_uncertainty_loss.1} parent=0 // pred_check_branch
    %196 = sbr.rel (0) target = $region37
  $region36: #{laplacian_aleatoric_uncertainty_loss.1} parent=0 // pred_region
    _
  $region37: #{laplacian_aleatoric_uncertainty_loss.1} parent=0 // pred_fallthru
    _

</llo_original>
